<compile_context>
chip_gen: v7x
topology: tpu7x:2x2x1
jax: 0.10.0
libtpu: 0.0.40
codegen_flags: <defaults>
</compile_context>

<pallas_src>
import functools

import jax
import jax.numpy as jnp
from jax import lax
from jax.experimental import pallas as pl
from jax.experimental.pallas import tpu as pltpu


def _sim_tile(rows, cols):
    """rows (R, D) @ cols (C, D)^T on the MXU: bf16 in, f32 accumulate."""
    return lax.dot_general(
        rows, cols,
        dimension_numbers=(((1,), (1,)), ((), ())),
        preferred_element_type=jnp.float32)


def _ntxent_kernel(f1r_ref, f2r_ref, f1c_ref, f2c_ref,     # bf16 inputs
                   out_ref,                                  # (2, TR, 1) f32
                   lA_ref, lB_ref,                           # (TR, 1) f32
                   *, inv_t):
    ri = pl.program_id(0)
    ci = pl.program_id(1)
    tr = f1r_ref.shape[0]
    tc = f1c_ref.shape[0]

    # ---- per-row-tile init (first column tile) -----------------------------
    @pl.when(ci == 0)
    def _():
        lA_ref[...] = jnp.zeros(lA_ref.shape, jnp.float32)
        lB_ref[...] = jnp.zeros(lB_ref.shape, jnp.float32)

    rA = f1r_ref[...]                    # (TR, D) bf16, already unit-norm rows
    rB = f2r_ref[...]
    cA = f1c_ref[...]                    # (TC, D) bf16
    cB = f2c_ref[...]

    # ---- similarity quadrants for this (row tile, col tile) pair -----------
    sAA = _sim_tile(rA, cA)              # cosine similarities, f32
    sAB = _sim_tile(rA, cB)
    sBA = _sim_tile(rB, cA)
    sBB = _sim_tile(rB, cB)

    # Global-diagonal mask: only the AA / BB quadrants can contain it.
    row_ids = lax.broadcasted_iota(jnp.int32, (tr, tc), 0) + ri * tr
    col_ids = lax.broadcasted_iota(jnp.int32, (tr, tc), 1) + ci * tc
    diag = row_ids == col_ids

    # ---- accumulate exp sums with the static bound max = 1/T ---------------
    # sim <= 1 (up to bf16 rounding) => exp((sim - 1)/T) <= ~1: no running max.
    def exp_rowsum(s, mask_diag):
        e = jnp.exp((s - 1.0) * inv_t)
        if mask_diag:
            e = jnp.where(diag, 0.0, e)
        return jnp.sum(e, axis=1, keepdims=True)

    lA_ref[...] += exp_rowsum(sAA, True) + exp_rowsum(sAB, False)
    lB_ref[...] += exp_rowsum(sBA, False) + exp_rowsum(sBB, True)

    # ---- finalize at the last column tile ----------------------------------
    @pl.when(ci == pl.num_programs(1) - 1)
    def _():
        # positive logit: row i of view 1 pairs with row i of view 2.
        pos = jnp.sum(rA.astype(jnp.float32) * rB.astype(jnp.float32),
                      axis=1, keepdims=True) * inv_t               # (TR, 1)
        # Floor only guards pathological full-underflow (extremely small T);
        # there is no cancellation here (l is a sum of positive terms).
        lse_a = jnp.log(jnp.maximum(lA_ref[...], 1e-37)) + inv_t
        lse_b = jnp.log(jnp.maximum(lB_ref[...], 1e-37)) + inv_t
        out_ref[0] = lse_a - pos
        out_ref[1] = lse_b - pos


def _pick_tile(dim, target, prefer_even=False):
    """Largest multiple-of-8 divisor of `dim` <= target (preferring an even
    tile count when asked); falls back to the full dimension."""
    if dim <= target:
        return dim
    best = None
    t = (target // 8) * 8
    while t >= 8:
        if dim % t == 0:
            if not prefer_even or (dim // t) % 2 == 0:
                return t
            if best is None:
                best = t
        t -= 8
    # TODO(synk): dims with no multiple-of-8 divisor fall back to one full
    # block; for very large awkward batches pad+mask the batch instead.
    return best if best is not None else dim


def contrastive_loss(feature1, feature2, temperature=0.5,
                     row_tile=None, col_tile=None):
    """JAX/Pallas equivalent of ContrastiveLoss.forward(feature1, feature2)."""
    assert feature1.shape == feature2.shape and feature1.ndim == 2
    b, d = feature1.shape

    # ---- prologue (plain JAX, O(B*D)): pad, L2-normalize, cast to bf16 -----
    if d % 128 != 0:
        pad = (-d) % 128
        feature1 = jnp.pad(feature1, ((0, 0), (0, pad)))
        feature2 = jnp.pad(feature2, ((0, 0), (0, pad)))
        d += pad

    def normalize_bf16(x):
        x = x.astype(jnp.float32)
        sumsq = jnp.sum(x * x, axis=1, keepdims=True)
        inv = lax.rsqrt(jnp.maximum(sumsq, 1e-24))    # == 1 / max(||x||, 1e-12)
        return (x * inv).astype(jnp.bfloat16)

    f1n = normalize_bf16(feature1)
    f2n = normalize_bf16(feature2)

    # ---- tiling -------------------------------------------------------------
    if row_tile is None:
        # >=2 (preferably even #) row tiles so v7x megacore can split the
        # parallel axis; 384-512 keeps v6e MXU-bound once inputs are bf16.
        row_tile = _pick_tile(b, min(512, max(8, b // 2)), prefer_even=True)
    if col_tile is None:
        col_tile = _pick_tile(b, 512)
    tr, tc = row_tile, col_tile
    assert b % tr == 0 and b % tc == 0
    assert tr == b or tr % 8 == 0
    assert tc == b or tc % 8 == 0

    kernel = functools.partial(_ntxent_kernel, inv_t=1.0 / float(temperature))

    per_row = pl.pallas_call(
        kernel,
        out_shape=jax.ShapeDtypeStruct((2, b, 1), jnp.float32),
        grid_spec=pltpu.PrefetchScalarGridSpec(
            num_scalar_prefetch=0,
            grid=(b // tr, b // tc),        # (row tiles [parallel], col tiles)
            in_specs=[
                pl.BlockSpec((tr, d), lambda ri, ci: (ri, 0)),   # view-1 rows
                pl.BlockSpec((tr, d), lambda ri, ci: (ri, 0)),   # view-2 rows
                pl.BlockSpec((tc, d), lambda ri, ci: (ci, 0)),   # view-1 cols
                pl.BlockSpec((tc, d), lambda ri, ci: (ci, 0)),   # view-2 cols
            ],
            out_specs=pl.BlockSpec((2, tr, 1), lambda ri, ci: (0, ri, 0)),
            scratch_shapes=[
                pltpu.VMEM((tr, 1), jnp.float32),   # exp-sum, view-1 rows
                pltpu.VMEM((tr, 1), jnp.float32),   # exp-sum, view-2 rows
            ]),
        compiler_params=pltpu.CompilerParams(
            dimension_semantics=("parallel", "arbitrary"),
            vmem_limit_bytes=48 * 1024 * 1024),     # <= v7x physical headroom
    )(f1n, f2n, f1n, f2n)

    return jnp.mean(per_row)


def _reference_loss(feature1, feature2, temperature=0.5):
    """Pure-JAX f32 reference mirroring the PyTorch module."""
    features = jnp.concatenate([feature1, feature2], axis=0).astype(jnp.float32)
    n = features.shape[0]
    bs = n // 2
    norm = jnp.maximum(jnp.linalg.norm(features, axis=1, keepdims=True), 1e-12)
    fn = features / norm
    sim = jnp.dot(fn, fn.T, precision=jax.lax.Precision.HIGHEST) / temperature
    idx = jnp.arange(n)
    pos = sim[idx, (idx + bs) % n]
    sim_masked = jnp.where(idx[:, None] == idx[None, :], -jnp.inf, sim)
    m = jnp.max(sim_masked, axis=1, keepdims=True)
    lse = jnp.log(jnp.sum(jnp.exp(sim_masked - m), axis=1)) + m[:, 0]
    return jnp.mean(lse - pos)


if __name__ == "__main__":
    key = jax.random.PRNGKey(0)
    k1, k2 = jax.random.split(key)
    B, D = 64, 96                        # D pads to 128 inside the wrapper
    feature1 = jax.random.normal(k1, (B, D), dtype=jnp.float32)
    feature2 = jax.random.normal(k2, (B, D), dtype=jnp.float32)

    # Default tiling (2 row tiles x 1 column tile).
    loss_default = jax.block_until_ready(
        contrastive_loss(feature1, feature2, temperature=0.5))
    # Single block per axis.
    loss_single = jax.block_until_ready(
        contrastive_loss(feature1, feature2, temperature=0.5,
                         row_tile=B, col_tile=B))
    # 4 row tiles x 2 column tiles: exercises the online accumulation over the
    # reduction axis and the in-tile diagonal masking across tile boundaries.
    loss_tiled = jax.block_until_ready(
        contrastive_loss(feature1, feature2, temperature=0.5,
                         row_tile=16, col_tile=32))

    ref = jax.block_until_ready(_reference_loss(feature1, feature2, 0.5))

    # bf16 normalized MXU operands vs the full-f32 reference: small tolerance.
    for name, val in (("default", loss_default), ("single", loss_single),
                      ("tiled", loss_tiled)):
        assert jnp.allclose(val, ref, rtol=3e-2, atol=3e-2), (name, val, ref)
    # Different tilings see identical bf16 inputs -> must agree tightly.
    assert jnp.allclose(loss_default, loss_single, rtol=1e-4, atol=1e-4), (
        loss_default, loss_single)
    assert jnp.allclose(loss_default, loss_tiled, rtol=1e-4, atol=1e-4), (
        loss_default, loss_tiled)

    print("KERNEL_OK")
</pallas_src>

<mosaic_0001>
module attributes {stable_mosaic.version = 11 : i64} {
  func.func @_ntxent_kernel(%arg0: i32, %arg1: i32, %arg2: memref<32x128xbf16, #tpu.memory_space<vmem>>, %arg3: memref<32x128xbf16, #tpu.memory_space<vmem>>, %arg4: memref<64x128xbf16, #tpu.memory_space<vmem>>, %arg5: memref<64x128xbf16, #tpu.memory_space<vmem>>, %arg6: memref<2x32x1xf32, #tpu.memory_space<vmem>>, %arg7: memref<32x1xf32, #tpu.memory_space<vmem>>, %arg8: memref<32x1xf32, #tpu.memory_space<vmem>>) attributes {dimension_semantics = [#tpu.dimension_semantics<parallel>, #tpu.dimension_semantics<arbitrary>], iteration_bounds = array<i64: 2, 1>, scalar_prefetch = 0 : i64, scratch_operands = 2 : i64, tpu.core_type = #tpu.core_type<tc>, window_params = [{transform_indices = @transform_0, window_bounds = array<i64: 32, 128>}, {transform_indices = @transform_1, window_bounds = array<i64: 32, 128>}, {transform_indices = @transform_2, window_bounds = array<i64: 64, 128>}, {transform_indices = @transform_3, window_bounds = array<i64: 64, 128>}, {transform_indices = @transform_4, window_bounds = array<i64: 2, 32, 1>}]} {
    %c0_i32 = arith.constant 0 : i32
    %0 = arith.cmpi eq, %arg1, %c0_i32 : i32
    %1 = arith.extui %0 : i1 to i32
    %c0_i32_0 = arith.constant 0 : i32
    %2 = arith.cmpi ne, %1, %c0_i32_0 : i32
    scf.if %2 {
      %cst_35 = arith.constant 0.000000e+00 : f32
      %63 = vector.broadcast %cst_35 : f32 to vector<32x1xf32>
      %c0_36 = arith.constant 0 : index
      %c0_37 = arith.constant 0 : index
      %64 = vector.load %arg7[%c0_36, %c0_37] : memref<32x1xf32, #tpu.memory_space<vmem>>, vector<32x1xf32>
      tpu.vector_store %arg7[%c0_36, %c0_37], %63 {strides = array<i32>} : memref<32x1xf32, #tpu.memory_space<vmem>>, vector<32x1xf32>,
      %cst_38 = arith.constant 0.000000e+00 : f32
      %65 = vector.broadcast %cst_38 : f32 to vector<32x1xf32>
      %c0_39 = arith.constant 0 : index
      %c0_40 = arith.constant 0 : index
      %66 = vector.load %arg8[%c0_39, %c0_40] : memref<32x1xf32, #tpu.memory_space<vmem>>, vector<32x1xf32>
      tpu.vector_store %arg8[%c0_39, %c0_40], %65 {strides = array<i32>} : memref<32x1xf32, #tpu.memory_space<vmem>>, vector<32x1xf32>,
    } else {
    }
    %c0 = arith.constant 0 : index
    %c0_1 = arith.constant 0 : index
    %3 = vector.load %arg2[%c0, %c0_1] : memref<32x128xbf16, #tpu.memory_space<vmem>>, vector<32x128xbf16>
    %c0_2 = arith.constant 0 : index
    %c0_3 = arith.constant 0 : index
    %4 = vector.load %arg3[%c0_2, %c0_3] : memref<32x128xbf16, #tpu.memory_space<vmem>>, vector<32x128xbf16>
    %c0_4 = arith.constant 0 : index
    %c0_5 = arith.constant 0 : index
    %5 = vector.load %arg4[%c0_4, %c0_5] : memref<64x128xbf16, #tpu.memory_space<vmem>>, vector<64x128xbf16>
    %c0_6 = arith.constant 0 : index
    %c0_7 = arith.constant 0 : index
    %6 = vector.load %arg5[%c0_6, %c0_7] : memref<64x128xbf16, #tpu.memory_space<vmem>>, vector<64x128xbf16>
    %cst = arith.constant dense<0.000000e+00> : vector<32x64xf32>
    %7 = tpu.matmul %3, %5, %cst {dimension_numbers = #tpu.dot_dimension_numbers<[1], [1], [0], [0], [0, 0, 1, 0], [], []>} : vector<32x128xbf16>, vector<64x128xbf16>, vector<32x64xf32> -> vector<32x64xf32>
    %cst_8 = arith.constant dense<0.000000e+00> : vector<32x64xf32>
    %8 = tpu.matmul %3, %6, %cst_8 {dimension_numbers = #tpu.dot_dimension_numbers<[1], [1], [0], [0], [0, 0, 1, 0], [], []>} : vector<32x128xbf16>, vector<64x128xbf16>, vector<32x64xf32> -> vector<32x64xf32>
    %cst_9 = arith.constant dense<0.000000e+00> : vector<32x64xf32>
    %9 = tpu.matmul %4, %5, %cst_9 {dimension_numbers = #tpu.dot_dimension_numbers<[1], [1], [0], [0], [0, 0, 1, 0], [], []>} : vector<32x128xbf16>, vector<64x128xbf16>, vector<32x64xf32> -> vector<32x64xf32>
    %cst_10 = arith.constant dense<0.000000e+00> : vector<32x64xf32>
    %10 = tpu.matmul %4, %6, %cst_10 {dimension_numbers = #tpu.dot_dimension_numbers<[1], [1], [0], [0], [0, 0, 1, 0], [], []>} : vector<32x128xbf16>, vector<64x128xbf16>, vector<32x64xf32> -> vector<32x64xf32>
    %11 = tpu.iota {dimensions = array<i32: 0>} : vector<32x64xi32>
    %c32_i32 = arith.constant 32 : i32
    %12 = arith.muli %arg0, %c32_i32 : i32
    %13 = vector.broadcast %12 : i32 to vector<32x64xi32>
    %14 = arith.addi %11, %13 : vector<32x64xi32>
    %15 = tpu.iota {dimensions = array<i32: 1>} : vector<32x64xi32>
    %c64_i32 = arith.constant 64 : i32
    %16 = arith.muli %arg1, %c64_i32 : i32
    %17 = vector.broadcast %16 : i32 to vector<32x64xi32>
    %18 = arith.addi %15, %17 : vector<32x64xi32>
    %19 = arith.cmpi eq, %14, %18 : vector<32x64xi32>
    %c0_11 = arith.constant 0 : index
    %c0_12 = arith.constant 0 : index
    %20 = vector.load %arg7[%c0_11, %c0_12] : memref<32x1xf32, #tpu.memory_space<vmem>>, vector<32x1xf32>
    %cst_13 = arith.constant 1.000000e+00 : f32
    %21 = vector.broadcast %cst_13 : f32 to vector<32x64xf32>
    %22 = arith.subf %7, %21 : vector<32x64xf32>
    %cst_14 = arith.constant 2.000000e+00 : f32
    %23 = vector.broadcast %cst_14 : f32 to vector<32x64xf32>
    %24 = arith.mulf %22, %23 : vector<32x64xf32>
    %25 = math.exp %24 : vector<32x64xf32>
    %cst_15 = arith.constant 0.000000e+00 : f32
    %26 = vector.broadcast %cst_15 : f32 to vector<32x64xf32>
    %27 = arith.select %19, %26, %25 : vector<32x64xi1>, vector<32x64xf32>
    %cst_16 = arith.constant dense<0.000000e+00> : vector<32xf32>
    %28 = vector.multi_reduction <add>, %27, %cst_16 [1] : vector<32x64xf32> to vector<32xf32>
    %29 = vector.shape_cast %28 : vector<32xf32> to vector<32x1xf32>
    %cst_17 = arith.constant 1.000000e+00 : f32
    %30 = vector.broadcast %cst_17 : f32 to vector<32x64xf32>
    %31 = arith.subf %8, %30 : vector<32x64xf32>
    %cst_18 = arith.constant 2.000000e+00 : f32
    %32 = vector.broadcast %cst_18 : f32 to vector<32x64xf32>
    %33 = arith.mulf %31, %32 : vector<32x64xf32>
    %34 = math.exp %33 : vector<32x64xf32>
    %cst_19 = arith.constant dense<0.000000e+00> : vector<32xf32>
    %35 = vector.multi_reduction <add>, %34, %cst_19 [1] : vector<32x64xf32> to vector<32xf32>
    %36 = vector.shape_cast %35 : vector<32xf32> to vector<32x1xf32>
    %37 = arith.addf %29, %36 : vector<32x1xf32>
    %38 = arith.addf %20, %37 : vector<32x1xf32>
    %c0_20 = arith.constant 0 : index
    %c0_21 = arith.constant 0 : index
    %39 = vector.load %arg7[%c0_20, %c0_21] : memref<32x1xf32, #tpu.memory_space<vmem>>, vector<32x1xf32>
    tpu.vector_store %arg7[%c0_20, %c0_21], %38 {strides = array<i32>} : memref<32x1xf32, #tpu.memory_space<vmem>>, vector<32x1xf32>,
    %c0_22 = arith.constant 0 : index
    %c0_23 = arith.constant 0 : index
    %40 = vector.load %arg8[%c0_22, %c0_23] : memref<32x1xf32, #tpu.memory_space<vmem>>, vector<32x1xf32>
    %cst_24 = arith.constant 1.000000e+00 : f32
    %41 = vector.broadcast %cst_24 : f32 to vector<32x64xf32>
    %42 = arith.subf %9, %41 : vector<32x64xf32>
    %cst_25 = arith.constant 2.000000e+00 : f32
    %43 = vector.broadcast %cst_25 : f32 to vector<32x64xf32>
    %44 = arith.mulf %42, %43 : vector<32x64xf32>
    %45 = math.exp %44 : vector<32x64xf32>
    %cst_26 = arith.constant dense<0.000000e+00> : vector<32xf32>
    %46 = vector.multi_reduction <add>, %45, %cst_26 [1] : vector<32x64xf32> to vector<32xf32>
    %47 = vector.shape_cast %46 : vector<32xf32> to vector<32x1xf32>
    %cst_27 = arith.constant 1.000000e+00 : f32
    %48 = vector.broadcast %cst_27 : f32 to vector<32x64xf32>
    %49 = arith.subf %10, %48 : vector<32x64xf32>
    %cst_28 = arith.constant 2.000000e+00 : f32
    %50 = vector.broadcast %cst_28 : f32 to vector<32x64xf32>
    %51 = arith.mulf %49, %50 : vector<32x64xf32>
    %52 = math.exp %51 : vector<32x64xf32>
    %cst_29 = arith.constant 0.000000e+00 : f32
    %53 = vector.broadcast %cst_29 : f32 to vector<32x64xf32>
    %54 = arith.select %19, %53, %52 : vector<32x64xi1>, vector<32x64xf32>
    %cst_30 = arith.constant dense<0.000000e+00> : vector<32xf32>
    %55 = vector.multi_reduction <add>, %54, %cst_30 [1] : vector<32x64xf32> to vector<32xf32>
    %56 = vector.shape_cast %55 : vector<32xf32> to vector<32x1xf32>
    %57 = arith.addf %47, %56 : vector<32x1xf32>
    %58 = arith.addf %40, %57 : vector<32x1xf32>
    %c0_31 = arith.constant 0 : index
    %c0_32 = arith.constant 0 : index
    %59 = vector.load %arg8[%c0_31, %c0_32] : memref<32x1xf32, #tpu.memory_space<vmem>>, vector<32x1xf32>
    tpu.vector_store %arg8[%c0_31, %c0_32], %58 {strides = array<i32>} : memref<32x1xf32, #tpu.memory_space<vmem>>, vector<32x1xf32>,
    %c0_i32_33 = arith.constant 0 : i32
    %60 = arith.cmpi eq, %arg1, %c0_i32_33 : i32
    %61 = arith.extui %60 : i1 to i32
    %c0_i32_34 = arith.constant 0 : i32
    %62 = arith.cmpi ne, %61, %c0_i32_34 : i32
    scf.if %62 {
      %63 = arith.extf %3 : vector<32x128xbf16> to vector<32x128xf32>
      %64 = arith.extf %4 : vector<32x128xbf16> to vector<32x128xf32>
      %65 = arith.mulf %63, %64 : vector<32x128xf32>
      %cst_35 = arith.constant dense<0.000000e+00> : vector<32xf32>
      %66 = vector.multi_reduction <add>, %65, %cst_35 [1] : vector<32x128xf32> to vector<32xf32>
      %67 = vector.shape_cast %66 : vector<32xf32> to vector<32x1xf32>
      %cst_36 = arith.constant 2.000000e+00 : f32
      %68 = vector.broadcast %cst_36 : f32 to vector<32x1xf32>
      %69 = arith.mulf %67, %68 : vector<32x1xf32>
      %c0_37 = arith.constant 0 : index
      %c0_38 = arith.constant 0 : index
      %70 = vector.load %arg7[%c0_37, %c0_38] : memref<32x1xf32, #tpu.memory_space<vmem>>, vector<32x1xf32>
      %cst_39 = arith.constant 9.99999991E-38 : f32
      %71 = vector.broadcast %cst_39 : f32 to vector<32x1xf32>
      %72 = arith.maximumf %70, %71 : vector<32x1xf32>
      %73 = math.log %72 : vector<32x1xf32>
      %cst_40 = arith.constant 2.000000e+00 : f32
      %74 = vector.broadcast %cst_40 : f32 to vector<32x1xf32>
      %75 = arith.addf %73, %74 : vector<32x1xf32>
      %c0_41 = arith.constant 0 : index
      %c0_42 = arith.constant 0 : index
      %76 = vector.load %arg8[%c0_41, %c0_42] : memref<32x1xf32, #tpu.memory_space<vmem>>, vector<32x1xf32>
      %cst_43 = arith.constant 9.99999991E-38 : f32
      %77 = vector.broadcast %cst_43 : f32 to vector<32x1xf32>
      %78 = arith.maximumf %76, %77 : vector<32x1xf32>
      %79 = math.log %78 : vector<32x1xf32>
      %cst_44 = arith.constant 2.000000e+00 : f32
      %80 = vector.broadcast %cst_44 : f32 to vector<32x1xf32>
      %81 = arith.addf %79, %80 : vector<32x1xf32>
      %82 = arith.subf %75, %69 : vector<32x1xf32>
      %c0_45 = arith.constant 0 : index
      %c0_46 = arith.constant 0 : index
      %c0_47 = arith.constant 0 : index
      %83 = vector.load %arg6[%c0_45, %c0_46, %c0_47] : memref<2x32x1xf32, #tpu.memory_space<vmem>>, vector<1x32x1xf32>
      %84 = vector.shape_cast %83 : vector<1x32x1xf32> to vector<32x1xf32>
      %85 = vector.shape_cast %82 : vector<32x1xf32> to vector<1x32x1xf32>
      tpu.vector_store %arg6[%c0_45, %c0_46, %c0_47], %85 {strides = array<i32>} : memref<2x32x1xf32, #tpu.memory_space<vmem>>, vector<1x32x1xf32>,
      %86 = arith.subf %81, %69 : vector<32x1xf32>
      %c1 = arith.constant 1 : index
      %c0_48 = arith.constant 0 : index
      %c0_49 = arith.constant 0 : index
      %87 = vector.load %arg6[%c1, %c0_48, %c0_49] : memref<2x32x1xf32, #tpu.memory_space<vmem>>, vector<1x32x1xf32>
      %88 = vector.shape_cast %87 : vector<1x32x1xf32> to vector<32x1xf32>
      %89 = vector.shape_cast %86 : vector<32x1xf32> to vector<1x32x1xf32>
      tpu.vector_store %arg6[%c1, %c0_48, %c0_49], %89 {strides = array<i32>} : memref<2x32x1xf32, #tpu.memory_space<vmem>>, vector<1x32x1xf32>,
    } else {
    }
    return
  }
  func.func @transform_0(%arg0: i32, %arg1: i32) -> (i32, i32) {
    %c0_i32 = arith.constant 0 : i32
    %c0_i32_0 = arith.constant 0 : i32
    return %arg0, %c0_i32 : i32, i32
  }
  func.func @transform_1(%arg0: i32, %arg1: i32) -> (i32, i32) {
    %c0_i32 = arith.constant 0 : i32
    %c0_i32_0 = arith.constant 0 : i32
    return %arg0, %c0_i32 : i32, i32
  }
  func.func @transform_2(%arg0: i32, %arg1: i32) -> (i32, i32) {
    %c0_i32 = arith.constant 0 : i32
    %c0_i32_0 = arith.constant 0 : i32
    return %arg1, %c0_i32 : i32, i32
  }
  func.func @transform_3(%arg0: i32, %arg1: i32) -> (i32, i32) {
    %c0_i32 = arith.constant 0 : i32
    %c0_i32_0 = arith.constant 0 : i32
    return %arg1, %c0_i32 : i32, i32
  }
  func.func @transform_4(%arg0: i32, %arg1: i32) -> (i32, i32, i32) {
    %c0_i32 = arith.constant 0 : i32
    %c0_i32_0 = arith.constant 0 : i32
    %c0_i32_1 = arith.constant 0 : i32
    return %c0_i32, %arg0, %c0_i32_0 : i32, i32, i32
  }
}

</mosaic_0001>

<llo_original>
// kernel: tpu_custom_call.1
$region0: #{tpu_custom_call.1}
  #allocation0 [shape = 'u32[]', space=smem, size = 0x4, offset = 0x4, fixed_abs, tag = 'smem constant byte address 0x4 - core index']
  #allocation1 [shape = 'u32[144,128]{1,0:T(1,128)}', space=vmem, size = 0x12000, scoped, tag = 'internal scratch']
  #allocation2 [shape = 'f32[32,1]{1,0:T(8,128)}', space=vmem, size = 0x4000, scoped, tag = 'scratch operand']
  #allocation3 [shape = 'f32[32,1]{1,0:T(8,128)}', space=vmem, size = 0x4000, scoped, tag = 'scratch operand']
  %s0 = inlined_call_operand.hbm [shape: bf16[64,128], index: 0, kind: input, shape index: {}]
  %s1 = inlined_call_operand.hbm [shape: bf16[64,128], index: 1, kind: input, shape index: {}]
  %s2 = inlined_call_operand.hbm [shape: bf16[64,128], index: 2, kind: input, shape index: {}]
  %s3 = inlined_call_operand.hbm [shape: bf16[64,128], index: 3, kind: input, shape index: {}]
  %s4 = inlined_call_operand.vmem [shape: f32[2,64,1], index: 4, kind: output, shape index: {}]
  %s5 = sld [smem:[#allocation0]]
  $region107: #{tpu_custom_call.1} parent=0
    _
  %s7 = ssub.s32 1, %s5
  %s8 = scalar_select 0, %s7, %s5
  $region1: #{tpu_custom_call.1} parent=0
    #allocation4 [shape = 'u8[16384]{0}', space=vmem, size = 0x4000, scoped, tag = 'input window, operand 0']
    #allocation5 [shape = 's32[2]{0}', space=sflag, size = 0x8, scoped, tag = 'scoped memory for tpu_custom_call.1']
    #allocation6 [shape = 'u8[16384]{0}', space=vmem, size = 0x4000, scoped, tag = 'input window, operand 1']
    #allocation7 [shape = 's32[2]{0}', space=sflag, size = 0x8, scoped, tag = 'scoped memory for tpu_custom_call.1']
    #allocation8 [shape = 'u8[16384]{0}', space=vmem, size = 0x4000, scoped, tag = 'input window, operand 2, single buffered']
    #allocation9 [shape = 'u8[16384]{0}', space=vmem, size = 0x4000, scoped, tag = 'input window, operand 3, single buffered']
    #allocation10 [shape = 's32[1]{0}', space=sflag, size = 0x4, scoped, tag = 'scoped memory for tpu_custom_call.1']
    #allocation11 [shape = 'u8[65536]{0}', space=vmem, size = 0x10000, scoped, tag = 'output window, operand 0']
    %9 = vsyncpa [#allocation5], 0
    %s10 = scalar_lea.sflag [#allocation5], 1
    %11 = vsyncpa %s10, 0
    %12 = vsyncpa [#allocation7], 0
    %s13 = scalar_lea.sflag [#allocation7], 1
    %14 = vsyncpa %s13, 0
    %15 = vsyncpa [#allocation10], 0
    loop: start=0, step=1, limit=4
    $region2: #{tpu_custom_call.1} parent=1 // loop_pre_header
      _
    $region3: #{tpu_custom_call.1} parent=1 // loop_header
      %s17 = sphi 0, %s21
      %p18 = scmp.ge.s32.totalorder %s17, 4
      %s24 = sphi 0, %s36
      %s25 = sphi 0, %s32
      %s26 = sphi 0, %s24
      %s27 = sphi 0, %s25
      %s28 = sphi 0, %s26
      %s29 = sphi 0, %s27
      %s39 = sphi 0, %s41
      %s42 = sphi 0, %s39
      %s43 = sphi 0, %s42
      %s59 = sphi 0, %s43
      %s65 = sphi 0, %s67
      %s68 = sphi 0, %s65
      %s69 = sphi 0, %s68
      %s85 = sphi 0, %s69
      %s91 = sphi 0, %s93
      %s94 = sphi 0, %s91
      %s95 = sphi 0, %s94
      %s111 = sphi 0, %s95
      %s117 = sphi 0, %s119
      %s120 = sphi 0, %s117
      %s121 = sphi 0, %s120
      %s137 = sphi 0, %s121
      %s143 = sphi 0, %s145
      %s146 = sphi 0, %s143
      %s147 = sphi 0, %s146
      %s163 = sphi 0, %s147
    $region4: #{tpu_custom_call.1} parent=1 // loop_header_branch
      %20 = sbr.rel (%p18) target = $region8
    $region5: #{tpu_custom_call.1} parent=1 // loop_body
      %s22 = ssub.s32 %s17, 1
      %s23 = ssub.s32 %s17, 2
      %s30 = sadd.s32 1, %s25
      %p31 = scmp.ge.s32.totalorder %s30, 1
      %s32 = scalar_select %p31, 0, %s30
      %s33 = sadd.s32 1, %s24
      %s34 = scalar_select %p31, %s33, %s24
      %p35 = scmp.ge.s32.totalorder %s34, 2
      %s36 = scalar_select %p35, 0, %s34
      %s37 = ssub.s32 %s24, %s36
      %p38 = scmp.eq.s32.totalorder %s37, 0
      %s40 = sadd.s32 %s39, 1
      %s41 = scalar_select %p38, %s39, %s40
      %p44 = pneg %p38
      %p45 = scmp.eq.s32.totalorder %s17, 1
      %p46 = por %p44, %p45
      %p47 = scmp.ne.s32.totalorder %s39, %s42
      %p48 = scmp.eq.s32.totalorder %s17, 0
      %p49 = por %p47, %p48
      %p50 = scmp.ne.s32.totalorder %s39, %s42
      %p51 = scmp.eq.s32.totalorder %s22, 1
      %p52 = por %p50, %p51
      %p53 = scmp.ne.s32.totalorder %s42, %s43
      %p54 = scmp.eq.s32.totalorder %s22, 0
      %p55 = por %p53, %p54
      %p56 = scmp.ne.s32.totalorder %s42, %s43
      %p57 = scmp.eq.s32.totalorder %s23, 1
      %p58 = por %p56, %p57
      %p60 = scmp.ne.s32.totalorder %s43, %s59
      %p61 = scmp.eq.s32.totalorder %s23, 0
      %p62 = por %p60, %p61
      %s63 = ssub.s32 %s24, %s36
      %p64 = scmp.eq.s32.totalorder %s63, 0
      %s66 = sadd.s32 %s65, 1
      %s67 = scalar_select %p64, %s65, %s66
      %p70 = pneg %p64
      %p71 = scmp.eq.s32.totalorder %s17, 1
      %p72 = por %p70, %p71
      %p73 = scmp.ne.s32.totalorder %s65, %s68
      %p74 = scmp.eq.s32.totalorder %s17, 0
      %p75 = por %p73, %p74
      %p76 = scmp.ne.s32.totalorder %s65, %s68
      %p77 = scmp.eq.s32.totalorder %s22, 1
      %p78 = por %p76, %p77
      %p79 = scmp.ne.s32.totalorder %s68, %s69
      %p80 = scmp.eq.s32.totalorder %s22, 0
      %p81 = por %p79, %p80
      %p82 = scmp.ne.s32.totalorder %s68, %s69
      %p83 = scmp.eq.s32.totalorder %s23, 1
      %p84 = por %p82, %p83
      %p86 = scmp.ne.s32.totalorder %s69, %s85
      %p87 = scmp.eq.s32.totalorder %s23, 0
      %p88 = por %p86, %p87
      %s89 = ssub.s32 %s25, %s32
      %p90 = scmp.eq.s32.totalorder %s89, 0
      %s92 = sadd.s32 %s91, 1
      %s93 = scalar_select %p90, %s91, %s92
      %p96 = pneg %p90
      %p97 = scmp.eq.s32.totalorder %s17, 1
      %p98 = por %p96, %p97
      %p99 = scmp.ne.s32.totalorder %s91, %s94
      %p100 = scmp.eq.s32.totalorder %s17, 0
      %p101 = por %p99, %p100
      %p102 = scmp.ne.s32.totalorder %s91, %s94
      %p103 = scmp.eq.s32.totalorder %s22, 1
      %p104 = por %p102, %p103
      %p105 = scmp.ne.s32.totalorder %s94, %s95
      %p106 = scmp.eq.s32.totalorder %s22, 0
      %p107 = por %p105, %p106
      %p108 = scmp.ne.s32.totalorder %s94, %s95
      %p109 = scmp.eq.s32.totalorder %s23, 1
      %p110 = por %p108, %p109
      %p112 = scmp.ne.s32.totalorder %s95, %s111
      %p113 = scmp.eq.s32.totalorder %s23, 0
      %p114 = por %p112, %p113
      %s115 = ssub.s32 %s25, %s32
      %p116 = scmp.eq.s32.totalorder %s115, 0
      %s118 = sadd.s32 %s117, 1
      %s119 = scalar_select %p116, %s117, %s118
      %p122 = pneg %p116
      %p123 = scmp.eq.s32.totalorder %s17, 1
      %p124 = por %p122, %p123
      %p125 = scmp.ne.s32.totalorder %s117, %s120
      %p126 = scmp.eq.s32.totalorder %s17, 0
      %p127 = por %p125, %p126
      %p128 = scmp.ne.s32.totalorder %s117, %s120
      %p129 = scmp.eq.s32.totalorder %s22, 1
      %p130 = por %p128, %p129
      %p131 = scmp.ne.s32.totalorder %s120, %s121
      %p132 = scmp.eq.s32.totalorder %s22, 0
      %p133 = por %p131, %p132
      %p134 = scmp.ne.s32.totalorder %s120, %s121
      %p135 = scmp.eq.s32.totalorder %s23, 1
      %p136 = por %p134, %p135
      %p138 = scmp.ne.s32.totalorder %s121, %s137
      %p139 = scmp.eq.s32.totalorder %s23, 0
      %p140 = por %p138, %p139
      %s141 = ssub.s32 %s24, %s36
      %p142 = scmp.eq.s32.totalorder %s141, 0
      %s144 = sadd.s32 %s143, 1
      %s145 = scalar_select %p142, %s143, %s144
      %p148 = pneg %p142
      %p149 = scmp.eq.s32.totalorder %s17, 1
      %p150 = por %p148, %p149
      %p151 = scmp.ne.s32.totalorder %s143, %s146
      %p152 = scmp.eq.s32.totalorder %s17, 0
      %p153 = por %p151, %p152
      %p154 = scmp.ne.s32.totalorder %s143, %s146
      %p155 = scmp.eq.s32.totalorder %s22, 1
      %p156 = por %p154, %p155
      %p157 = scmp.ne.s32.totalorder %s146, %s147
      %p158 = scmp.eq.s32.totalorder %s22, 0
      %p159 = por %p157, %p158
      %p160 = scmp.ne.s32.totalorder %s146, %s147
      %p161 = scmp.eq.s32.totalorder %s23, 1
      %p162 = por %p160, %p161
      %p164 = scmp.ne.s32.totalorder %s147, %s163
      %p165 = scmp.eq.s32.totalorder %s23, 0
      %p166 = por %p164, %p165
      %p167 = scmp.le.s32.totalorder 1, %s17
      %p168 = scmp.lt.s32.totalorder %s17, 3
      %p169 = pnand %p167, %p168
      %p170 = pneg %p169
      // Predicated region
      $region9: #{tpu_custom_call.1} parent=5 // pred_check
        _
      $region10: #{tpu_custom_call.1} parent=5 // pred_check_branch
        %172 = sbr.rel (%p169) target = $region12
      $region11: #{tpu_custom_call.1} parent=5 // pred_region
        %s173 = ssub.s32 %s17, 1
        // Predicated region
        $region13: #{tpu_custom_call.1} parent=11 // pred_check
          %p174 = pneg %p107
        $region14: #{tpu_custom_call.1} parent=11 // pred_check_branch
          %176 = sbr.rel (%p174) target = $region16
        $region15: #{tpu_custom_call.1} parent=11 // pred_region
          %s177 = smul.u32 8, %s27
          %s179 = ssub.s32 512, 512
          %180 = vsyncadd [#allocation7], %s179
          %s181 = smul.addr %s177, 64
          %s182 = scalar_lea.hbm %s2, %s181
          %s183 = sshll.u32 [#allocation8], 4
          %s184 = int_to_ptr.vmem [resolvable:$true] %s183
          %189 = dma.hbm_to_vmem [thread:$0]  %s182, 512, %s184, [#allocation7], 64, 64, 4
        $region16: #{tpu_custom_call.1} parent=11 // pred_fallthru
          _
        // Predicated region
        $region17: #{tpu_custom_call.1} parent=11 // pred_check
          %p190 = pneg %p133
        $region18: #{tpu_custom_call.1} parent=11 // pred_check_branch
          %192 = sbr.rel (%p190) target = $region20
        $region19: #{tpu_custom_call.1} parent=11 // pred_region
          %s193 = smul.u32 8, %s27
          %s195 = ssub.s32 512, 512
          %196 = vsyncadd [#allocation10], %s195
          %s197 = smul.addr %s193, 64
          %s198 = scalar_lea.hbm %s3, %s197
          %s199 = sshll.u32 [#allocation9], 4
          %s200 = int_to_ptr.vmem [resolvable:$true] %s199
          %205 = dma.hbm_to_vmem [thread:$0]  %s198, 512, %s200, [#allocation10], 64, 64, 4
        $region20: #{tpu_custom_call.1} parent=11 // pred_fallthru
          _
      $region12: #{tpu_custom_call.1} parent=5 // pred_fallthru
        _
      %p206 = scmp.lt.s32.totalorder %s17, 2
      // Predicated region
      $region21: #{tpu_custom_call.1} parent=5 // pred_check
        %p207 = pneg %p206
      $region22: #{tpu_custom_call.1} parent=5 // pred_check_branch
        %209 = sbr.rel (%p207) target = $region24
      $region23: #{tpu_custom_call.1} parent=5 // pred_region
        // Predicated region
        $region25: #{tpu_custom_call.1} parent=23 // pred_check
          %p210 = pneg %p49
        $region26: #{tpu_custom_call.1} parent=23 // pred_check_branch
          %212 = sbr.rel (%p210) target = $region28
        $region27: #{tpu_custom_call.1} parent=23 // pred_region
          %s213 = sand.u32 %s39, 1
          %s214 = scalar_lea.sflag [#allocation5], %s213
          %s215 = sand.u32 %s39, 1
          %s216 = smul.addr %s215, 16
          %s217 = scalar_lea.vmem [#allocation4], %s216
          %s218 = smul.u32 4, %s24
          %s220 = ssub.s32 256, 256
          %221 = vsyncadd %s214, %s220
          %s222 = smul.addr %s218, 64
          %s223 = scalar_lea.hbm %s0, %s222
          %s224 = sshll.u32 %s217, 4
          %s225 = int_to_ptr.vmem [resolvable:$true] %s224
          %230 = dma.hbm_to_vmem [thread:$0]  %s223, 256, %s225, %s214, 64, 64, 4
        $region28: #{tpu_custom_call.1} parent=23 // pred_fallthru
          _
        // Predicated region
        $region29: #{tpu_custom_call.1} parent=23 // pred_check
          %p231 = pneg %p75
        $region30: #{tpu_custom_call.1} parent=23 // pred_check_branch
          %233 = sbr.rel (%p231) target = $region32
        $region31: #{tpu_custom_call.1} parent=23 // pred_region
          %s234 = sand.u32 %s17, 1
          %s235 = scalar_lea.sflag [#allocation7], %s234
          %s236 = sand.u32 %s65, 1
          %s237 = smul.addr %s236, 16
          %s238 = scalar_lea.vmem [#allocation6], %s237
          %s239 = smul.u32 4, %s24
          %s241 = ssub.s32 256, 256
          %242 = vsyncadd %s235, %s241
          %s243 = smul.addr %s239, 64
          %s244 = scalar_lea.hbm %s1, %s243
          %s245 = sshll.u32 %s238, 4
          %s246 = int_to_ptr.vmem [resolvable:$true] %s245
          %251 = dma.hbm_to_vmem [thread:$0]  %s244, 256, %s246, %s235, 64, 64, 4
        $region32: #{tpu_custom_call.1} parent=23 // pred_fallthru
          _
      $region24: #{tpu_custom_call.1} parent=5 // pred_fallthru
        _
      %p252 = scmp.le.s32.totalorder 1, %s17
      %p253 = scmp.lt.s32.totalorder %s17, 3
      %p254 = pnand %p252, %p253
      %p255 = pneg %p254
      // Predicated region
      $region33: #{tpu_custom_call.1} parent=5 // pred_check
        _
      $region34: #{tpu_custom_call.1} parent=5 // pred_check_branch
        %257 = sbr.rel (%p254) target = $region36
      $region35: #{tpu_custom_call.1} parent=5 // pred_region
        %s258 = ssub.s32 %s17, 1
        %s259 = sand.u32 %s42, 1
        %s260 = scalar_lea.sflag [#allocation5], %s259
        %s261 = sand.u32 %s42, 1
        %s262 = smul.addr %s261, 16
        %s263 = scalar_lea.vmem [#allocation4], %s262
        // Predicated region
        $region37: #{tpu_custom_call.1} parent=35 // pred_check
          %p264 = pneg %p55
        $region38: #{tpu_custom_call.1} parent=35 // pred_check_branch
          %266 = sbr.rel (%p264) target = $region40
        $region39: #{tpu_custom_call.1} parent=35 // pred_region
          %267 = dma.done %s260, 256
        $region40: #{tpu_custom_call.1} parent=35 // pred_fallthru
          _
        %s268 = sand.u32 %s22, 1
        %s269 = scalar_lea.sflag [#allocation7], %s268
        %s270 = sand.u32 %s68, 1
        %s271 = smul.addr %s270, 16
        %s272 = scalar_lea.vmem [#allocation6], %s271
        // Predicated region
        $region41: #{tpu_custom_call.1} parent=35 // pred_check
          %p273 = pneg %p81
        $region42: #{tpu_custom_call.1} parent=35 // pred_check_branch
          %275 = sbr.rel (%p273) target = $region44
        $region43: #{tpu_custom_call.1} parent=35 // pred_region
          %276 = dma.done %s269, 256
        $region44: #{tpu_custom_call.1} parent=35 // pred_fallthru
          _
        // Predicated region
        $region45: #{tpu_custom_call.1} parent=35 // pred_check
          %p277 = pneg %p107
        $region46: #{tpu_custom_call.1} parent=35 // pred_check_branch
          %279 = sbr.rel (%p277) target = $region48
        $region47: #{tpu_custom_call.1} parent=35 // pred_region
          %280 = dma.done [#allocation7], 512
        $region48: #{tpu_custom_call.1} parent=35 // pred_fallthru
          _
        // Predicated region
        $region49: #{tpu_custom_call.1} parent=35 // pred_check
          %p281 = pneg %p133
        $region50: #{tpu_custom_call.1} parent=35 // pred_check_branch
          %283 = sbr.rel (%p281) target = $region52
        $region51: #{tpu_custom_call.1} parent=35 // pred_region
          %284 = dma.done [#allocation10], 512
        $region52: #{tpu_custom_call.1} parent=35 // pred_fallthru
          _
        %s285 = sand.u32 %s42, 1
        %s286 = scalar_lea.sflag [#allocation5], %s285
        %s287 = sand.u32 %s42, 1
        %s288 = smul.addr %s287, 16
        %s289 = scalar_lea.vmem [#allocation4], %s288
        %p290 = pneg %p55
        %p291 = pneg %p52
        %s292 = sand.u32 %s22, 1
        %s293 = scalar_lea.sflag [#allocation7], %s292
        %s294 = sand.u32 %s68, 1
        %s295 = smul.addr %s294, 16
        %s296 = scalar_lea.vmem [#allocation6], %s295
        %p297 = pneg %p81
        %p298 = pneg %p78
        %p299 = pneg %p107
        %p300 = pneg %p104
        %p301 = pneg %p133
        %p302 = pneg %p130
        %p303 = pneg %p159
        %p304 = pneg %p156
        %s305 = sand.u32 %s146, 1
        %s306 = sand.u32 %s146, 1
        %s307 = smul.addr %s306, 64
        %s308 = scalar_lea.vmem [#allocation11], %s307
        %s309 = smul.u32 4, %s26
        %s310 = smul.u32 4, %s26
        %s311 = smul.u32 8, %s27
        %s312 = smul.u32 8, %s27
        %s313 = smul.u32 4, %s26
        %p315 = scmp.eq.s32.totalorder %s27, 0
        // Predicated region
        $region53: #{tpu_custom_call.1} parent=35 // pred_check
          %p316 = pneg %p315
        $region54: #{tpu_custom_call.1} parent=35 // pred_check_branch
          %318 = sbr.rel (%p316) target = $region56
        $region55: #{tpu_custom_call.1} parent=35 // pred_region
          %vm319 = vcmask 7168
          %320 = vst.msk [vmem:[#allocation2] sm:$0xff] %vm319, 0.0
          %321 = vst.msk [vmem:[#allocation2 + $0x8] sm:$0xff] %vm319, 0.0
          %322 = vst.msk [vmem:[#allocation2 + $0x10] sm:$0xff] %vm319, 0.0
          %323 = vst.msk [vmem:[#allocation2 + $0x18] sm:$0xff] %vm319, 0.0
          %324 = vst.msk [vmem:[#allocation3] sm:$0xff] %vm319, 0.0
          %325 = vst.msk [vmem:[#allocation3 + $0x8] sm:$0xff] %vm319, 0.0
          %326 = vst.msk [vmem:[#allocation3 + $0x10] sm:$0xff] %vm319, 0.0
          %327 = vst.msk [vmem:[#allocation3 + $0x18] sm:$0xff] %vm319, 0.0
        $region56: #{tpu_custom_call.1} parent=35 // pred_fallthru
          _
        %v328 = vld [vmem:[%s263] sm:$0xf]
        %v329 = vld [vmem:[%s263 + $0x4] sm:$0xf]
        %v330 = vld [vmem:[%s263 + $0x8] sm:$0xf]
        %v331 = vld [vmem:[%s263 + $0xc] sm:$0xf]
        %v332 = vld [vmem:[%s272] sm:$0xf]
        %v333 = vld [vmem:[%s272 + $0x4] sm:$0xf]
        %v334 = vld [vmem:[%s272 + $0x8] sm:$0xf]
        %v335 = vld [vmem:[%s272 + $0xc] sm:$0xf]
        %v336 = vld [vmem:[#allocation8] sm:$0xf]
        %v337 = vld [vmem:[#allocation8 + $0x4] sm:$0xf]
        %v338 = vld [vmem:[#allocation8 + $0x8] sm:$0xf]
        %v339 = vld [vmem:[#allocation8 + $0xc] sm:$0xf]
        %v340 = vld [vmem:[#allocation8 + $0x10] sm:$0xf]
        %v341 = vld [vmem:[#allocation8 + $0x14] sm:$0xf]
        %v342 = vld [vmem:[#allocation8 + $0x18] sm:$0xf]
        %v343 = vld [vmem:[#allocation8 + $0x1c] sm:$0xf]
        %v344 = vld [vmem:[#allocation9] sm:$0xf]
        %v345 = vld [vmem:[#allocation9 + $0x4] sm:$0xf]
        %v346 = vld [vmem:[#allocation9 + $0x8] sm:$0xf]
        %v347 = vld [vmem:[#allocation9 + $0xc] sm:$0xf]
        %v348 = vld [vmem:[#allocation9 + $0x10] sm:$0xf]
        %v349 = vld [vmem:[#allocation9 + $0x14] sm:$0xf]
        %v350 = vld [vmem:[#allocation9 + $0x18] sm:$0xf]
        %v351 = vld [vmem:[#allocation9 + $0x1c] sm:$0xf]
        %v356 = vunpack.c.l.b16 %v328
        %v357 = vunpack.c.l.b16 %v329
        %v358 = vunpack.c.l.b16 %v330
        %v359 = vunpack.c.l.b16 %v331
        %v360 = vpack.c.b16 %v357, %v356
        %v361 = vpack.c.b16 %v359, %v358
        %v372 = vunpack.c.l.b16 %v336
        %v373 = vunpack.c.l.b16 %v337
        %v374 = vunpack.c.l.b16 %v338
        %v375 = vunpack.c.l.b16 %v339
        %v376 = vunpack.c.l.b16 %v340
        %v377 = vunpack.c.l.b16 %v341
        %v378 = vunpack.c.l.b16 %v342
        %v379 = vunpack.c.l.b16 %v343
        %v380 = vpack.c.b16 %v373, %v372
        %v381 = vpack.c.b16 %v375, %v374
        %v382 = vpack.c.b16 %v377, %v376
        %v383 = vpack.c.b16 %v379, %v378
        %388 = vmatprep.subr.bf16.mxu0 0
        %389 = vmatpush1.bf16.xpose.msra.mxu0 %v380
        %390 = vmatprep.subr.bf16.mxu0 0
        %391 = vmatpush1.bf16.xpose.msra.mxu0 %v381
        %392 = vmatprep.subr.bf16.mxu0 0
        %393 = vmatpush1.bf16.xpose.msra.mxu0 %v382
        %394 = vmatprep.subr.bf16.mxu0 0
        %395 = vmatpush1.bf16.xpose.msra.mxu0 %v383
        %396 = vmatprep.subr.bf16.mxu0 0
        %397 = vmatpush1.bf16.xpose.msra.mxu0 0
        %398 = vmatprep.subr.bf16.mxu0 0
        %399 = vmatpush1.bf16.xpose.msra.mxu0 0
        %400 = vmatprep.subr.bf16.mxu0 0
        %401 = vmatpush1.bf16.xpose.msra.mxu0 0
        %402 = vmatprep.subr.bf16.mxu0 0
        %403 = vmatpush1.bf16.xpose.msra.mxu0 0
        %404 = vmatprep.subr.bf16.mxu0 0
        %405 = vmatpush1.bf16.xpose.msra.mxu0 0
        %406 = vmatprep.subr.bf16.mxu0 0
        %407 = vmatpush1.bf16.xpose.msra.mxu0 0
        %408 = vmatprep.subr.bf16.mxu0 0
        %409 = vmatpush1.bf16.xpose.msra.mxu0 0
        %410 = vmatprep.subr.bf16.mxu0 0
        %411 = vmatpush1.bf16.xpose.msra.mxu0 0
        %412 = vmatprep.subr.bf16.mxu0 0
        %413 = vmatpush1.bf16.xpose.msra.mxu0 0
        %414 = vmatprep.subr.bf16.mxu0 0
        %415 = vmatpush1.bf16.xpose.msra.mxu0 0
        %416 = vmatprep.subr.bf16.mxu0 0
        %417 = vmatpush1.bf16.xpose.msra.mxu0 0
        %418 = vmatprep.subr.bf16.mxu0 0
        %419 = vmatpush1.bf16.xpose.msra.mxu0 0
        %420 = vmatprep.mubr.bf16.mxu0 0
        %421 = vmatmul.mubr.bf16.gmra.mrb[0].mxu0 %v360
        %v422 = vpop.f32.mrb[0].mxu0
        %v423 = vadd.f32 0.0, %v422
        %v424 = vpop.f32.mrb[0].mxu0
        %v425 = vpop.f32.mrb[0].mxu0
        %v426 = vadd.f32 0.0, %v425
        %v427 = vpop.f32.mrb[0].mxu0
        %428 = vmatprep.mubr.bf16.mxu0 0
        %429 = vmatmul.mubr.bf16.gmra.mrb[0].mxu0 %v361
        %v430 = vpop.f32.mrb[0].mxu0
        %v431 = vadd.f32 0.0, %v430
        %v432 = vpop.f32.mrb[0].mxu0
        %v433 = vpop.f32.mrb[0].mxu0
        %v434 = vadd.f32 0.0, %v433
        %v435 = vpop.f32.mrb[0].mxu0
        %436 = vdwg.mxu0
        %v445 = vunpack.c.l.b16 %v344
        %v446 = vunpack.c.l.b16 %v345
        %v447 = vunpack.c.l.b16 %v346
        %v448 = vunpack.c.l.b16 %v347
        %v449 = vunpack.c.l.b16 %v348
        %v450 = vunpack.c.l.b16 %v349
        %v451 = vunpack.c.l.b16 %v350
        %v452 = vunpack.c.l.b16 %v351
        %v453 = vpack.c.b16 %v446, %v445
        %v454 = vpack.c.b16 %v448, %v447
        %v455 = vpack.c.b16 %v450, %v449
        %v456 = vpack.c.b16 %v452, %v451
        %461 = vmatprep.subr.bf16.mxu0 0
        %462 = vmatpush1.bf16.xpose.msra.mxu0 %v453
        %463 = vmatprep.subr.bf16.mxu0 0
        %464 = vmatpush1.bf16.xpose.msra.mxu0 %v454
        %465 = vmatprep.subr.bf16.mxu0 0
        %466 = vmatpush1.bf16.xpose.msra.mxu0 %v455
        %467 = vmatprep.subr.bf16.mxu0 0
        %468 = vmatpush1.bf16.xpose.msra.mxu0 %v456
        %469 = vmatprep.subr.bf16.mxu0 0
        %470 = vmatpush1.bf16.xpose.msra.mxu0 0
        %471 = vmatprep.subr.bf16.mxu0 0
        %472 = vmatpush1.bf16.xpose.msra.mxu0 0
        %473 = vmatprep.subr.bf16.mxu0 0
        %474 = vmatpush1.bf16.xpose.msra.mxu0 0
        %475 = vmatprep.subr.bf16.mxu0 0
        %476 = vmatpush1.bf16.xpose.msra.mxu0 0
        %477 = vmatprep.subr.bf16.mxu0 0
        %478 = vmatpush1.bf16.xpose.msra.mxu0 0
        %479 = vmatprep.subr.bf16.mxu0 0
        %480 = vmatpush1.bf16.xpose.msra.mxu0 0
        %481 = vmatprep.subr.bf16.mxu0 0
        %482 = vmatpush1.bf16.xpose.msra.mxu0 0
        %483 = vmatprep.subr.bf16.mxu0 0
        %484 = vmatpush1.bf16.xpose.msra.mxu0 0
        %485 = vmatprep.subr.bf16.mxu0 0
        %486 = vmatpush1.bf16.xpose.msra.mxu0 0
        %487 = vmatprep.subr.bf16.mxu0 0
        %488 = vmatpush1.bf16.xpose.msra.mxu0 0
        %489 = vmatprep.subr.bf16.mxu0 0
        %490 = vmatpush1.bf16.xpose.msra.mxu0 0
        %491 = vmatprep.subr.bf16.mxu0 0
        %492 = vmatpush1.bf16.xpose.msra.mxu0 0
        %493 = vmatprep.mubr.bf16.mxu0 0
        %494 = vmatmul.mubr.bf16.gmra.mrb[0].mxu0 %v360
        %v495 = vpop.f32.mrb[0].mxu0
        %v496 = vadd.f32 0.0, %v495
        %v497 = vpop.f32.mrb[0].mxu0
        %v498 = vpop.f32.mrb[0].mxu0
        %v499 = vadd.f32 0.0, %v498
        %v500 = vpop.f32.mrb[0].mxu0
        %501 = vmatprep.mubr.bf16.mxu0 0
        %502 = vmatmul.mubr.bf16.gmra.mrb[0].mxu0 %v361
        %v503 = vpop.f32.mrb[0].mxu0
        %v504 = vadd.f32 0.0, %v503
        %v505 = vpop.f32.mrb[0].mxu0
        %v506 = vpop.f32.mrb[0].mxu0
        %v507 = vadd.f32 0.0, %v506
        %v508 = vpop.f32.mrb[0].mxu0
        %509 = vdwg.mxu0
        %v514 = vunpack.c.l.b16 %v332
        %v515 = vunpack.c.l.b16 %v333
        %v516 = vunpack.c.l.b16 %v334
        %v517 = vunpack.c.l.b16 %v335
        %v518 = vpack.c.b16 %v515, %v514
        %v519 = vpack.c.b16 %v517, %v516
        %522 = vmatprep.subr.bf16.mxu0 0
        %523 = vmatpush1.bf16.xpose.msra.mxu0 %v380
        %524 = vmatprep.subr.bf16.mxu0 0
        %525 = vmatpush1.bf16.xpose.msra.mxu0 %v381
        %526 = vmatprep.subr.bf16.mxu0 0
        %527 = vmatpush1.bf16.xpose.msra.mxu0 %v382
        %528 = vmatprep.subr.bf16.mxu0 0
        %529 = vmatpush1.bf16.xpose.msra.mxu0 %v383
        %530 = vmatprep.subr.bf16.mxu0 0
        %531 = vmatpush1.bf16.xpose.msra.mxu0 0
        %532 = vmatprep.subr.bf16.mxu0 0
        %533 = vmatpush1.bf16.xpose.msra.mxu0 0
        %534 = vmatprep.subr.bf16.mxu0 0
        %535 = vmatpush1.bf16.xpose.msra.mxu0 0
        %536 = vmatprep.subr.bf16.mxu0 0
        %537 = vmatpush1.bf16.xpose.msra.mxu0 0
        %538 = vmatprep.subr.bf16.mxu0 0
        %539 = vmatpush1.bf16.xpose.msra.mxu0 0
        %540 = vmatprep.subr.bf16.mxu0 0
        %541 = vmatpush1.bf16.xpose.msra.mxu0 0
        %542 = vmatprep.subr.bf16.mxu0 0
        %543 = vmatpush1.bf16.xpose.msra.mxu0 0
        %544 = vmatprep.subr.bf16.mxu0 0
        %545 = vmatpush1.bf16.xpose.msra.mxu0 0
        %546 = vmatprep.subr.bf16.mxu0 0
        %547 = vmatpush1.bf16.xpose.msra.mxu0 0
        %548 = vmatprep.subr.bf16.mxu0 0
        %549 = vmatpush1.bf16.xpose.msra.mxu0 0
        %550 = vmatprep.subr.bf16.mxu0 0
        %551 = vmatpush1.bf16.xpose.msra.mxu0 0
        %552 = vmatprep.subr.bf16.mxu0 0
        %553 = vmatpush1.bf16.xpose.msra.mxu0 0
        %554 = vmatprep.mubr.bf16.mxu0 0
        %555 = vmatmul.mubr.bf16.gmra.mrb[0].mxu0 %v518
        %v556 = vpop.f32.mrb[0].mxu0
        %v557 = vadd.f32 0.0, %v556
        %v558 = vpop.f32.mrb[0].mxu0
        %v559 = vpop.f32.mrb[0].mxu0
        %v560 = vadd.f32 0.0, %v559
        %v561 = vpop.f32.mrb[0].mxu0
        %562 = vmatprep.mubr.bf16.mxu0 0
        %563 = vmatmul.mubr.bf16.gmra.mrb[0].mxu0 %v519
        %v564 = vpop.f32.mrb[0].mxu0
        %v565 = vadd.f32 0.0, %v564
        %v566 = vpop.f32.mrb[0].mxu0
        %v567 = vpop.f32.mrb[0].mxu0
        %v568 = vadd.f32 0.0, %v567
        %v569 = vpop.f32.mrb[0].mxu0
        %570 = vdwg.mxu0
        %571 = vmatprep.subr.bf16.mxu0 0
        %572 = vmatpush1.bf16.xpose.msra.mxu0 %v453
        %573 = vmatprep.subr.bf16.mxu0 0
        %574 = vmatpush1.bf16.xpose.msra.mxu0 %v454
        %575 = vmatprep.subr.bf16.mxu0 0
        %576 = vmatpush1.bf16.xpose.msra.mxu0 %v455
        %577 = vmatprep.subr.bf16.mxu0 0
        %578 = vmatpush1.bf16.xpose.msra.mxu0 %v456
        %579 = vmatprep.subr.bf16.mxu0 0
        %580 = vmatpush1.bf16.xpose.msra.mxu0 0
        %581 = vmatprep.subr.bf16.mxu0 0
        %582 = vmatpush1.bf16.xpose.msra.mxu0 0
        %583 = vmatprep.subr.bf16.mxu0 0
        %584 = vmatpush1.bf16.xpose.msra.mxu0 0
        %585 = vmatprep.subr.bf16.mxu0 0
        %586 = vmatpush1.bf16.xpose.msra.mxu0 0
        %587 = vmatprep.subr.bf16.mxu0 0
        %588 = vmatpush1.bf16.xpose.msra.mxu0 0
        %589 = vmatprep.subr.bf16.mxu0 0
        %590 = vmatpush1.bf16.xpose.msra.mxu0 0
        %591 = vmatprep.subr.bf16.mxu0 0
        %592 = vmatpush1.bf16.xpose.msra.mxu0 0
        %593 = vmatprep.subr.bf16.mxu0 0
        %594 = vmatpush1.bf16.xpose.msra.mxu0 0
        %595 = vmatprep.subr.bf16.mxu0 0
        %596 = vmatpush1.bf16.xpose.msra.mxu0 0
        %597 = vmatprep.subr.bf16.mxu0 0
        %598 = vmatpush1.bf16.xpose.msra.mxu0 0
        %599 = vmatprep.subr.bf16.mxu0 0
        %600 = vmatpush1.bf16.xpose.msra.mxu0 0
        %601 = vmatprep.subr.bf16.mxu0 0
        %602 = vmatpush1.bf16.xpose.msra.mxu0 0
        %603 = vmatprep.mubr.bf16.mxu0 0
        %604 = vmatmul.mubr.bf16.gmra.mrb[0].mxu0 %v518
        %v605 = vpop.f32.mrb[0].mxu0
        %v606 = vadd.f32 0.0, %v605
        %v607 = vpop.f32.mrb[0].mxu0
        %v608 = vpop.f32.mrb[0].mxu0
        %v609 = vadd.f32 0.0, %v608
        %v610 = vpop.f32.mrb[0].mxu0
        %611 = vmatprep.mubr.bf16.mxu0 0
        %612 = vmatmul.mubr.bf16.gmra.mrb[0].mxu0 %v519
        %v613 = vpop.f32.mrb[0].mxu0
        %v614 = vadd.f32 0.0, %v613
        %v615 = vpop.f32.mrb[0].mxu0
        %v616 = vpop.f32.mrb[0].mxu0
        %v617 = vadd.f32 0.0, %v616
        %v618 = vpop.f32.mrb[0].mxu0
        %619 = vdwg.mxu0
        %v620 = vlaneseq
        %v621 = vshrl.u32 %v620, 7
        %v622 = vadd.s32 %v621, 8
        %v623 = vadd.s32 %v621, 16
        %v624 = vadd.s32 %v621, 24
        %s625 = smul.u32 %s26, 32
        %v626 = vstv %s625
        %v627 = vadd.s32 %v621, %v626
        %v628 = vadd.s32 %v622, %v626
        %v629 = vadd.s32 %v623, %v626
        %v630 = vadd.s32 %v624, %v626
        %v631 = vlaneseq
        %v632 = vand.u32 %v631, 127
        %s633 = smul.u32 %s27, 64
        %v634 = vstv %s633
        %v635 = vadd.s32 %v632, %v634
        %vm636 = vcmp.eq.s32.totalorder %v627, %v635
        %vm637 = vcmp.eq.s32.totalorder %v628, %v635
        %vm638 = vcmp.eq.s32.totalorder %v629, %v635
        %vm639 = vcmp.eq.s32.totalorder %v630, %v635
        %v640 = vld [vmem:[#allocation2] sm:$0xff]
        %v641 = vld [vmem:[#allocation2 + $0x8] sm:$0xff]
        %v642 = vld [vmem:[#allocation2 + $0x10] sm:$0xff]
        %v643 = vld [vmem:[#allocation2 + $0x18] sm:$0xff]
        %v644 = vsub.f32 %v423, 1.0
        %v645 = vsub.f32 %v426, 1.0
        %v646 = vsub.f32 %v431, 1.0
        %v647 = vsub.f32 %v434, 1.0
        %v648 = vmul.f32 %v644, 2.0
        %v649 = vmul.f32 %v645, 2.0
        %v650 = vmul.f32 %v646, 2.0
        %v651 = vmul.f32 %v647, 2.0
        %v652 = vmul.f32 %v648, 1.442695
        %v653 = vpow.pop %v652
        %v654 = vmul.f32 %v649, 1.442695
        %v655 = vpow.pop %v654
        %v656 = vmul.f32 %v650, 1.442695
        %v657 = vpow.pop %v656
        %v658 = vmul.f32 %v651, 1.442695
        %v659 = vpow.pop %v658
        %v660 = vsel %vm636, 0.0, %v653
        %v661 = vsel %vm637, 0.0, %v655
        %v662 = vsel %vm638, 0.0, %v657
        %v663 = vsel %vm639, 0.0, %v659
        %vm664 = vcmask 523264
        %v665 = vsel %vm664, %v660, 0.0
        %666 = vadd.xlane.f32.xlu0 %v665
        %v667 = vpop.xlane.xlu0 %666
        %v668 = vsel %vm664, %v661, 0.0
        %669 = vadd.xlane.f32.xlu0 %v668
        %v670 = vpop.xlane.xlu0 %669
        %v671 = vsel %vm664, %v662, 0.0
        %672 = vadd.xlane.f32.xlu0 %v671
        %v673 = vpop.xlane.xlu0 %672
        %v674 = vsel %vm664, %v663, 0.0
        %675 = vadd.xlane.f32.xlu0 %v674
        %v676 = vpop.xlane.xlu0 %675
        %v677 = vsub.f32 %v496, 1.0
        %v678 = vsub.f32 %v499, 1.0
        %v679 = vsub.f32 %v504, 1.0
        %v680 = vsub.f32 %v507, 1.0
        %v681 = vmul.f32 %v677, 2.0
        %v682 = vmul.f32 %v678, 2.0
        %v683 = vmul.f32 %v679, 2.0
        %v684 = vmul.f32 %v680, 2.0
        %v685 = vmul.f32 %v681, 1.442695
        %v686 = vpow.pop %v685
        %v687 = vmul.f32 %v682, 1.442695
        %v688 = vpow.pop %v687
        %v689 = vmul.f32 %v683, 1.442695
        %v690 = vpow.pop %v689
        %v691 = vmul.f32 %v684, 1.442695
        %v692 = vpow.pop %v691
        %v693 = vsel %vm664, %v686, 0.0
        %694 = vadd.xlane.f32.xlu0 %v693
        %v695 = vpop.xlane.xlu0 %694
        %v696 = vsel %vm664, %v688, 0.0
        %697 = vadd.xlane.f32.xlu0 %v696
        %v698 = vpop.xlane.xlu0 %697
        %v699 = vsel %vm664, %v690, 0.0
        %700 = vadd.xlane.f32.xlu0 %v699
        %v701 = vpop.xlane.xlu0 %700
        %v702 = vsel %vm664, %v692, 0.0
        %703 = vadd.xlane.f32.xlu0 %v702
        %v704 = vpop.xlane.xlu0 %703
        %v705 = vadd.f32 %v667, %v695
        %v706 = vadd.f32 %v670, %v698
        %v707 = vadd.f32 %v673, %v701
        %v708 = vadd.f32 %v676, %v704
        %v709 = vadd.f32 %v640, %v705
        %v710 = vadd.f32 %v641, %v706
        %v711 = vadd.f32 %v642, %v707
        %v712 = vadd.f32 %v643, %v708
        %vm713 = vcmask 7168
        %714 = vst.msk [vmem:[#allocation2] sm:$0xff] %vm713, %v709
        %715 = vst.msk [vmem:[#allocation2 + $0x8] sm:$0xff] %vm713, %v710
        %716 = vst.msk [vmem:[#allocation2 + $0x10] sm:$0xff] %vm713, %v711
        %717 = vst.msk [vmem:[#allocation2 + $0x18] sm:$0xff] %vm713, %v712
        %v718 = vld [vmem:[#allocation3] sm:$0xff]
        %v719 = vld [vmem:[#allocation3 + $0x8] sm:$0xff]
        %v720 = vld [vmem:[#allocation3 + $0x10] sm:$0xff]
        %v721 = vld [vmem:[#allocation3 + $0x18] sm:$0xff]
        %v722 = vsub.f32 %v557, 1.0
        %v723 = vsub.f32 %v560, 1.0
        %v724 = vsub.f32 %v565, 1.0
        %v725 = vsub.f32 %v568, 1.0
        %v726 = vmul.f32 %v722, 2.0
        %v727 = vmul.f32 %v723, 2.0
        %v728 = vmul.f32 %v724, 2.0
        %v729 = vmul.f32 %v725, 2.0
        %v730 = vmul.f32 %v726, 1.442695
        %v731 = vpow.pop %v730
        %v732 = vmul.f32 %v727, 1.442695
        %v733 = vpow.pop %v732
        %v734 = vmul.f32 %v728, 1.442695
        %v735 = vpow.pop %v734
        %v736 = vmul.f32 %v729, 1.442695
        %v737 = vpow.pop %v736
        %v738 = vsel %vm664, %v731, 0.0
        %739 = vadd.xlane.f32.xlu0 %v738
        %v740 = vpop.xlane.xlu0 %739
        %v741 = vsel %vm664, %v733, 0.0
        %742 = vadd.xlane.f32.xlu0 %v741
        %v743 = vpop.xlane.xlu0 %742
        %v744 = vsel %vm664, %v735, 0.0
        %745 = vadd.xlane.f32.xlu0 %v744
        %v746 = vpop.xlane.xlu0 %745
        %v747 = vsel %vm664, %v737, 0.0
        %748 = vadd.xlane.f32.xlu0 %v747
        %v749 = vpop.xlane.xlu0 %748
        %v750 = vsub.f32 %v606, 1.0
        %v751 = vsub.f32 %v609, 1.0
        %v752 = vsub.f32 %v614, 1.0
        %v753 = vsub.f32 %v617, 1.0
        %v754 = vmul.f32 %v750, 2.0
        %v755 = vmul.f32 %v751, 2.0
        %v756 = vmul.f32 %v752, 2.0
        %v757 = vmul.f32 %v753, 2.0
        %v758 = vmul.f32 %v754, 1.442695
        %v759 = vpow.pop %v758
        %v760 = vmul.f32 %v755, 1.442695
        %v761 = vpow.pop %v760
        %v762 = vmul.f32 %v756, 1.442695
        %v763 = vpow.pop %v762
        %v764 = vmul.f32 %v757, 1.442695
        %v765 = vpow.pop %v764
        %v766 = vsel %vm636, 0.0, %v759
        %v767 = vsel %vm637, 0.0, %v761
        %v768 = vsel %vm638, 0.0, %v763
        %v769 = vsel %vm639, 0.0, %v765
        %v770 = vsel %vm664, %v766, 0.0
        %771 = vadd.xlane.f32.xlu0 %v770
        %v772 = vpop.xlane.xlu0 %771
        %v773 = vsel %vm664, %v767, 0.0
        %774 = vadd.xlane.f32.xlu0 %v773
        %v775 = vpop.xlane.xlu0 %774
        %v776 = vsel %vm664, %v768, 0.0
        %777 = vadd.xlane.f32.xlu0 %v776
        %v778 = vpop.xlane.xlu0 %777
        %v779 = vsel %vm664, %v769, 0.0
        %780 = vadd.xlane.f32.xlu0 %v779
        %v781 = vpop.xlane.xlu0 %780
        %v782 = vadd.f32 %v740, %v772
        %v783 = vadd.f32 %v743, %v775
        %v784 = vadd.f32 %v746, %v778
        %v785 = vadd.f32 %v749, %v781
        %v786 = vadd.f32 %v718, %v782
        %v787 = vadd.f32 %v719, %v783
        %v788 = vadd.f32 %v720, %v784
        %v789 = vadd.f32 %v721, %v785
        %790 = vst.msk [vmem:[#allocation3] sm:$0xff] %vm713, %v786
        %791 = vst.msk [vmem:[#allocation3 + $0x8] sm:$0xff] %vm713, %v787
        %792 = vst.msk [vmem:[#allocation3 + $0x10] sm:$0xff] %vm713, %v788
        %793 = vst.msk [vmem:[#allocation3 + $0x18] sm:$0xff] %vm713, %v789
        // Predicated region
        $region57: #{tpu_custom_call.1} parent=35 // pred_check
          %p794 = pneg %p315
        $region58: #{tpu_custom_call.1} parent=35 // pred_check_branch
          %796 = sbr.rel (%p794) target = $region60
        $region59: #{tpu_custom_call.1} parent=35 // pred_region
          %v797 = vunpack.c.l.bf16 %v328
          %v798 = vunpack.c.l.bf16 %v329
          %v799 = vunpack.c.l.bf16 %v330
          %v800 = vunpack.c.l.bf16 %v331
          %v801 = vunpack.c.l.bf16 %v332
          %v802 = vunpack.c.l.bf16 %v333
          %v803 = vunpack.c.l.bf16 %v334
          %v804 = vunpack.c.l.bf16 %v335
          %v805 = vmul.f32 %v797, %v801
          %v806 = vmul.f32 %v798, %v802
          %v807 = vmul.f32 %v799, %v803
          %v808 = vmul.f32 %v800, %v804
          %809 = vadd.xlane.f32.xlu0 %v805
          %v810 = vpop.xlane.xlu0 %809
          %811 = vadd.xlane.f32.xlu0 %v806
          %v812 = vpop.xlane.xlu0 %811
          %813 = vadd.xlane.f32.xlu0 %v807
          %v814 = vpop.xlane.xlu0 %813
          %815 = vadd.xlane.f32.xlu0 %v808
          %v816 = vpop.xlane.xlu0 %815
          %v817 = vmul.f32 %v810, 2.0
          %v818 = vmul.f32 %v812, 2.0
          %v819 = vmul.f32 %v814, 2.0
          %v820 = vmul.f32 %v816, 2.0
          %v821 = vld [vmem:[#allocation2] sm:$0xff]
          %v822 = vld [vmem:[#allocation2 + $0x8] sm:$0xff]
          %v823 = vld [vmem:[#allocation2 + $0x10] sm:$0xff]
          %v824 = vld [vmem:[#allocation2 + $0x18] sm:$0xff]
          %v825 = vmax.f32 %v821, 1e-37
          %v826 = vmax.f32 %v822, 1e-37
          %v827 = vmax.f32 %v823, 1e-37
          %v828 = vmax.f32 %v824, 1e-37
          %v829 = vlog2.pop %v825
          %v830 = vmul.f32 %v829, 0.6931472
          %v831 = vlog2.pop %v826
          %v832 = vmul.f32 %v831, 0.6931472
          %v833 = vlog2.pop %v827
          %v834 = vmul.f32 %v833, 0.6931472
          %v835 = vlog2.pop %v828
          %v836 = vmul.f32 %v835, 0.6931472
          %v837 = vadd.f32 %v830, 2.0
          %v838 = vadd.f32 %v832, 2.0
          %v839 = vadd.f32 %v834, 2.0
          %v840 = vadd.f32 %v836, 2.0
          %v841 = vld [vmem:[#allocation3] sm:$0xff]
          %v842 = vld [vmem:[#allocation3 + $0x8] sm:$0xff]
          %v843 = vld [vmem:[#allocation3 + $0x10] sm:$0xff]
          %v844 = vld [vmem:[#allocation3 + $0x18] sm:$0xff]
          %v845 = vmax.f32 %v841, 1e-37
          %v846 = vmax.f32 %v842, 1e-37
          %v847 = vmax.f32 %v843, 1e-37
          %v848 = vmax.f32 %v844, 1e-37
          %v849 = vlog2.pop %v845
          %v850 = vmul.f32 %v849, 0.6931472
          %v851 = vlog2.pop %v846
          %v852 = vmul.f32 %v851, 0.6931472
          %v853 = vlog2.pop %v847
          %v854 = vmul.f32 %v853, 0.6931472
          %v855 = vlog2.pop %v848
          %v856 = vmul.f32 %v855, 0.6931472
          %v857 = vadd.f32 %v850, 2.0
          %v858 = vadd.f32 %v852, 2.0
          %v859 = vadd.f32 %v854, 2.0
          %v860 = vadd.f32 %v856, 2.0
          %v861 = vsub.f32 %v837, %v817
          %v862 = vsub.f32 %v838, %v818
          %v863 = vsub.f32 %v839, %v819
          %v864 = vsub.f32 %v840, %v820
          %865 = vst.msk [vmem:[%s308] sm:$0xff] %vm713, %v861
          %866 = vst.msk [vmem:[%s308 + $0x8] sm:$0xff] %vm713, %v862
          %867 = vst.msk [vmem:[%s308 + $0x10] sm:$0xff] %vm713, %v863
          %868 = vst.msk [vmem:[%s308 + $0x18] sm:$0xff] %vm713, %v864
          %v869 = vsub.f32 %v857, %v817
          %v870 = vsub.f32 %v858, %v818
          %v871 = vsub.f32 %v859, %v819
          %v872 = vsub.f32 %v860, %v820
          %s873 = scalar_lea.vmem %s308, 32 [#allocation11]
          %874 = vst.msk [vmem:[%s873] sm:$0xff] %vm713, %v869
          %875 = vst.msk [vmem:[%s873 + $0x8] sm:$0xff] %vm713, %v870
          %876 = vst.msk [vmem:[%s873 + $0x10] sm:$0xff] %vm713, %v871
          %877 = vst.msk [vmem:[%s873 + $0x18] sm:$0xff] %vm713, %v872
        $region60: #{tpu_custom_call.1} parent=35 // pred_fallthru
          _
        %s878 = sand.u32 %s146, 1
        %s879 = sand.u32 %s146, 1
        %s880 = smul.addr %s879, 64
        %s881 = scalar_lea.vmem [#allocation11], %s880
        // Predicated region
        $region61: #{tpu_custom_call.1} parent=35 // pred_check
          %p882 = pneg %p156
        $region62: #{tpu_custom_call.1} parent=35 // pred_check_branch
          %884 = sbr.rel (%p882) target = $region64
        $region63: #{tpu_custom_call.1} parent=35 // pred_region
          %s885 = smul.u32 4, %s26
          %s886 = smul.addr %s885, 8
          %s887 = scalar_lea.vmem %s4, %s886
          // Predicated region
          $region65: #{tpu_custom_call.1} parent=63 // pred_check
            _
          $region66: #{tpu_custom_call.1} parent=63 // pred_check_branch
            %889 = sbr.rel (0) target = $region68
          $region67: #{tpu_custom_call.1} parent=63 // pred_region
            // Predicated region
            $region69: #{tpu_custom_call.1} parent=67 // pred_check
              _
            $region70: #{tpu_custom_call.1} parent=67 // pred_check_branch
              %891 = sbr.rel (0) target = $region72
            $region71: #{tpu_custom_call.1} parent=67 // pred_region
              // Predicated region
              $region84: #{tpu_custom_call.1} parent=71 // pred_check
                _
              $region85: #{tpu_custom_call.1} parent=71 // pred_check_branch
                %920 = sbr.rel (0) target = $region87
              $region86: #{tpu_custom_call.1} parent=71 // pred_region
                loop: start=0, step=1, limit=1
                $region88: #{tpu_custom_call.1} parent=86 // loop_pre_header
                  _
                $region89: #{tpu_custom_call.1} parent=86 // loop_header
                  %s922 = sphi 0, %s926
                  %p923 = scmp.ge.s32.totalorder %s922, 1
                  %s927 = sphi %s881, %s881
                  %s928 = sphi %s887, %s887
                $region90: #{tpu_custom_call.1} parent=86 // loop_header_branch
                  %925 = sbr.rel (%p923) target = $region94
                $region91: #{tpu_custom_call.1} parent=86 // loop_body
                  %v929 = vld [vmem:[%s927] sm:$0xff]
                  %930 = vst [vmem:[%s928] sm:$0xff] %v929
                  %v931 = vld [vmem:[%s927 + $0x8] sm:$0xff]
                  %932 = vst [vmem:[%s928 + $0x8] sm:$0xff] %v931
                  %v933 = vld [vmem:[%s927 + $0x10] sm:$0xff]
                  %934 = vst [vmem:[%s928 + $0x10] sm:$0xff] %v933
                  %v935 = vld [vmem:[%s927 + $0x18] sm:$0xff]
                  %936 = vst [vmem:[%s928 + $0x18] sm:$0xff] %v935
                  %v937 = vld [vmem:[%s927 + $0x20] sm:$0xff]
                  %938 = vst [vmem:[%s928 + $0x40] sm:$0xff] %v937
                  %v939 = vld [vmem:[%s927 + $0x28] sm:$0xff]
                  %940 = vst [vmem:[%s928 + $0x48] sm:$0xff] %v939
                  %v941 = vld [vmem:[%s927 + $0x30] sm:$0xff]
                  %942 = vst [vmem:[%s928 + $0x50] sm:$0xff] %v941
                  %v943 = vld [vmem:[%s927 + $0x38] sm:$0xff]
                  %944 = vst [vmem:[%s928 + $0x58] sm:$0xff] %v943
                $region92: #{tpu_custom_call.1} parent=86 // loop_footer
                  %s926 = sadd.s32 1, %s922
                $region93: #{tpu_custom_call.1} parent=86 // loop_footer_branch
                  %921 = sbr.rel target = $region89
                $region94: #{tpu_custom_call.1} parent=86 // loop_exit
                  _
              $region87: #{tpu_custom_call.1} parent=71 // pred_fallthru
                _
              // Predicated region
              $region95: #{tpu_custom_call.1} parent=71 // pred_check
                _
              $region96: #{tpu_custom_call.1} parent=71 // pred_check_branch
                %946 = sbr.rel target = $region98
              $region97: #{tpu_custom_call.1} parent=71 // pred_region
                _
              $region98: #{tpu_custom_call.1} parent=71 // pred_fallthru
                _
            $region72: #{tpu_custom_call.1} parent=67 // pred_fallthru
              _
            // Predicated region
            $region73: #{tpu_custom_call.1} parent=67 // pred_check
              _
            $region74: #{tpu_custom_call.1} parent=67 // pred_check_branch
              %893 = sbr.rel target = $region76
            $region75: #{tpu_custom_call.1} parent=67 // pred_region
              loop: start=0, step=1, limit=1
              $region77: #{tpu_custom_call.1} parent=75 // loop_pre_header
                _
              $region78: #{tpu_custom_call.1} parent=75 // loop_header
                %s896 = sphi 0, %s900
                %p897 = scmp.ge.s32.totalorder %s896, 1
                %s901 = sphi %s881, %s881
                %s902 = sphi %s887, %s887
              $region79: #{tpu_custom_call.1} parent=75 // loop_header_branch
                %899 = sbr.rel (%p897) target = $region83
              $region80: #{tpu_custom_call.1} parent=75 // loop_body
                %v903 = vld [vmem:[%s901] sm:$0xff]
                %904 = vst [vmem:[%s902] sm:$0xff] %v903
                %v905 = vld [vmem:[%s901 + $0x8] sm:$0xff]
                %906 = vst [vmem:[%s902 + $0x8] sm:$0xff] %v905
                %v907 = vld [vmem:[%s901 + $0x10] sm:$0xff]
                %908 = vst [vmem:[%s902 + $0x10] sm:$0xff] %v907
                %v909 = vld [vmem:[%s901 + $0x18] sm:$0xff]
                %910 = vst [vmem:[%s902 + $0x18] sm:$0xff] %v909
                %v911 = vld [vmem:[%s901 + $0x20] sm:$0xff]
                %912 = vst [vmem:[%s902 + $0x40] sm:$0xff] %v911
                %v913 = vld [vmem:[%s901 + $0x28] sm:$0xff]
                %914 = vst [vmem:[%s902 + $0x48] sm:$0xff] %v913
                %v915 = vld [vmem:[%s901 + $0x30] sm:$0xff]
                %916 = vst [vmem:[%s902 + $0x50] sm:$0xff] %v915
                %v917 = vld [vmem:[%s901 + $0x38] sm:$0xff]
                %918 = vst [vmem:[%s902 + $0x58] sm:$0xff] %v917
              $region81: #{tpu_custom_call.1} parent=75 // loop_footer
                %s900 = sadd.s32 1, %s896
              $region82: #{tpu_custom_call.1} parent=75 // loop_footer_branch
                %895 = sbr.rel target = $region78
              $region83: #{tpu_custom_call.1} parent=75 // loop_exit
                _
            $region76: #{tpu_custom_call.1} parent=67 // pred_fallthru
              _
          $region68: #{tpu_custom_call.1} parent=63 // pred_fallthru
            _
          %947 = vnop
        $region64: #{tpu_custom_call.1} parent=35 // pred_fallthru
          _
      $region36: #{tpu_custom_call.1} parent=5 // pred_fallthru
        _
      %p948 = scmp.le.s32.totalorder 2, %s17
      // Predicated region
      $region99: #{tpu_custom_call.1} parent=5 // pred_check
        %p949 = pneg %p948
      $region100: #{tpu_custom_call.1} parent=5 // pred_check_branch
        %951 = sbr.rel (%p949) target = $region102
      $region101: #{tpu_custom_call.1} parent=5 // pred_region
        %s952 = ssub.s32 %s17, 2
        // Predicated region
        $region103: #{tpu_custom_call.1} parent=101 // pred_check
          %p953 = pneg %p162
        $region104: #{tpu_custom_call.1} parent=101 // pred_check_branch
          %955 = sbr.rel (%p953) target = $region106
        $region105: #{tpu_custom_call.1} parent=101 // pred_region
          %s956 = sand.u32 %s147, 1
          %s957 = sand.u32 %s147, 1
          %s958 = smul.addr %s957, 64
          %s959 = scalar_lea.vmem [#allocation11], %s958
        $region106: #{tpu_custom_call.1} parent=101 // pred_fallthru
          _
      $region102: #{tpu_custom_call.1} parent=5 // pred_fallthru
        _
    $region6: #{tpu_custom_call.1} parent=1 // loop_footer
      %s21 = sadd.s32 1, %s17
    $region7: #{tpu_custom_call.1} parent=1 // loop_footer_branch
      %16 = sbr.rel target = $region3
    $region8: #{tpu_custom_call.1} parent=1 // loop_exit
      _
    %960 = vsyncpa [#allocation5], 1
    %s961 = scalar_lea.sflag [#allocation5], 1
    %962 = vsyncpa %s961, 1
    %963 = vsyncpa [#allocation7], 1
    %s964 = scalar_lea.sflag [#allocation7], 1
    %965 = vsyncpa %s964, 1
    %966 = vsyncpa [#allocation10], 1

</llo_original>
